<compile_context>
chip_gen: v5e
topology: v5e:2x2
jax: 0.10.0
libtpu: 0.0.40
codegen_flags: <defaults>
</compile_context>

<pallas_src>
import math

import jax
import jax.numpy as jnp
from jax.experimental import pallas as pl
from jax.experimental.pallas import tpu as pltpu


def token_embedding_kernel(x_ref, w_ref, o_ref):
    # x_ref: (tl, 3C)  -- row tile with the circular halo folded into channels
    # w_ref: (3C, td)  -- fused weight tile, w[k*C + c, o] == torch_weight[o, c, k]
    # o_ref: (tl, td)
    o_ref[...] = jnp.dot(
        x_ref[...], w_ref[...], preferred_element_type=jnp.float32
    ).astype(o_ref.dtype)


def _round_up(n, m):
    return ((n + m - 1) // m) * m


def token_embedding(x, w, *, compute_dtype=None, out_dtype=None):
    """x: (B, L, c_in); w: (3, c_in, d_model). Returns (B, L, d_model)."""
    B, L, C = x.shape
    K, C2, D = w.shape
    assert K == 3 and C2 == C

    if out_dtype is None:
        out_dtype = x.dtype

    # --- bake the circular wrap into a channels-concatenated copy of x -------
    # (done on the true L axis, before any padding, so wrap indices are exact)
    x_prev = jnp.roll(x, 1, axis=1)    # x[(t-1) mod L]
    x_next = jnp.roll(x, -1, axis=1)   # x[(t+1) mod L]
    x_cat = jnp.concatenate([x_prev, x, x_next], axis=-1)   # (B, L, 3C)

    # fused weight: row k*C + c of w_flat is torch_weight[:, c, k]
    w_flat = w.reshape(3 * C, D)

    if compute_dtype is not None:
        x_cat = x_cat.astype(compute_dtype)
        w_flat = w_flat.astype(compute_dtype)

    # --- flatten (B, L) into a single row axis --------------------------------
    R = B * L
    x_rows = x_cat.reshape(R, 3 * C)

    # --- lane-dense output: pad D to a multiple of 128 -------------------------
    D_pad = _round_up(D, 128)
    if D_pad != D:
        w_flat = jnp.pad(w_flat, ((0, 0), (0, D_pad - D)))

    # full output width per tile whenever it fits -> weight stays resident,
    # j grid axis collapses to 1
    if D_pad <= 1024:
        td = D_pad
    else:
        td = 128
        for cand in (1024, 896, 768, 640, 512, 384, 256, 128):
            if D_pad % cand == 0:
                td = cand
                break

    # --- row tiling: pick the tile FIRST, then pad rows up to a multiple ------
    # sublane granularity: 16 rows when any bf16 tile is involved, else 8
    sub = 16 if (compute_dtype == jnp.bfloat16 or out_dtype == jnp.bfloat16) else 8
    out_bytes = jnp.dtype(out_dtype).itemsize
    TL_MAX = 4096                        # up to an 8 MiB f32 output tile at td=512
    TILE_BUDGET = 8 * 1024 * 1024        # per output tile (double-buffered -> ~16 MiB)
    tl_budget = max(sub, (TILE_BUDGET // (td * out_bytes)) // sub * sub)
    tl = min(TL_MAX, tl_budget, _round_up(R, sub))
    # keep >= 2 row tiles when there is real work, so the software pipeline and
    # v7x's two TensorCores have something to overlap
    if _round_up(R, sub) >= 2048 and tl >= _round_up(R, sub):
        tl = _round_up((R + 1) // 2, sub)

    rows_pad = _round_up(R, tl)
    if rows_pad != R:
        x_rows = jnp.pad(x_rows, ((0, rows_pad - R), (0, 0)))

    grid = (rows_pad // tl, D_pad // td)   # D innermost: x row tile stays resident

    out = pl.pallas_call(
        token_embedding_kernel,
        out_shape=jax.ShapeDtypeStruct((rows_pad, D_pad), out_dtype),
        grid_spec=pltpu.PrefetchScalarGridSpec(
            num_scalar_prefetch=0,
            grid=grid,
            in_specs=[
                # x rows: constant index along j -> revisited / stays resident
                pl.BlockSpec((tl, 3 * C), lambda i, j: (i, 0)),
                # fused weight: constant along i -> resident for the whole kernel
                pl.BlockSpec((3 * C, td), lambda i, j: (0, j)),
            ],
            out_specs=pl.BlockSpec((tl, td), lambda i, j: (i, j)),
        ),
        compiler_params=pltpu.CompilerParams(
            # NOTE: on v7x, pltpu.CORE_PARALLEL on the row axis is a further option.
            dimension_semantics=("parallel", "parallel"),
            vmem_limit_bytes=32 * 1024 * 1024,
        ),
    )(x_rows, w_flat)

    # slice only when padding was actually added (otherwise return with no copy);
    # for zero-copy downstream use, prefer d_model already a multiple of 128.
    if rows_pad != R or D_pad != D:
        out = out[:R, :D]
    return out.reshape(B, L, D)


def make_weight(key, c_in, d_model):
    # nn.init.kaiming_normal_(weight, mode='fan_in', nonlinearity='leaky_relu')
    # on a Conv1d weight of shape (d_model, c_in, 3):
    #   fan_in = c_in * 3, gain = sqrt(2) (default a=0), std = gain / sqrt(fan_in)
    std = math.sqrt(2.0) / math.sqrt(c_in * 3)
    w_torch_layout = std * jax.random.normal(key, (d_model, c_in, 3), jnp.float32)
    # rearrange to (k, c_in, d_model) for the kernel
    return jnp.transpose(w_torch_layout, (2, 1, 0))


def reference(x, w):
    # pure-JAX reference of the circular conv (channels-last)
    x_prev = jnp.roll(x, 1, axis=1)
    x_next = jnp.roll(x, -1, axis=1)
    return (
        jnp.einsum("blc,cd->bld", x_prev, w[0])
        + jnp.einsum("blc,cd->bld", x, w[1])
        + jnp.einsum("blc,cd->bld", x_next, w[2])
    )


if __name__ == "__main__":
    key = jax.random.PRNGKey(0)

    # case 1: small shapes consistent with the module (batch=2, seq=16, c_in=4, d_model=32)
    B, L, C_IN, D_MODEL = 2, 16, 4, 32
    kx, kw = jax.random.split(key)
    x = jax.random.normal(kx, (B, L, C_IN), jnp.float32)
    w = make_weight(kw, C_IN, D_MODEL)
    ref = reference(x, w)

    out = jax.block_until_ready(token_embedding(x, w))
    assert out.shape == (B, L, D_MODEL)
    assert out.dtype == x.dtype
    assert jnp.allclose(out, ref, atol=1e-5, rtol=1e-5), "f32 mismatch vs reference"

    # bf16-operand / bf16-output path (f32 accumulate): loose tolerance
    out_bf16 = jax.block_until_ready(
        token_embedding(x, w, compute_dtype=jnp.bfloat16, out_dtype=jnp.bfloat16)
    )
    assert out_bf16.shape == (B, L, D_MODEL)
    assert out_bf16.dtype == jnp.bfloat16
    assert jnp.allclose(out_bf16.astype(jnp.float32), ref, atol=5e-2, rtol=5e-2), \
        "bf16 mismatch vs reference"

    # case 2: awkward (non-multiple) L and d_model to exercise the padding path
    B2, L2, C2_, D2 = 2, 13, 3, 20
    kx2, kw2 = jax.random.split(jax.random.PRNGKey(1))
    x2 = jax.random.normal(kx2, (B2, L2, C2_), jnp.float32)
    w2 = make_weight(kw2, C2_, D2)
    out2 = jax.block_until_ready(token_embedding(x2, w2))
    assert out2.shape == (B2, L2, D2)
    assert jnp.allclose(out2, reference(x2, w2), atol=1e-5, rtol=1e-5), \
        "padded-path mismatch vs reference"

    print("KERNEL_OK")
</pallas_src>

<mosaic_0001>
module attributes {stable_mosaic.version = 11 : i64} {
  func.func @token_embedding_kernel(%arg0: i32, %arg1: i32, %arg2: memref<32x12xf32, #tpu.memory_space<vmem>>, %arg3: memref<12x128xf32, #tpu.memory_space<vmem>>, %arg4: memref<32x128xf32, #tpu.memory_space<vmem>>) attributes {dimension_semantics = [#tpu.dimension_semantics<parallel>, #tpu.dimension_semantics<parallel>], iteration_bounds = array<i64: 1, 1>, scalar_prefetch = 0 : i64, scratch_operands = 0 : i64, tpu.core_type = #tpu.core_type<tc>, window_params = [{transform_indices = @transform_0, window_bounds = array<i64: 32, 12>}, {transform_indices = @transform_1, window_bounds = array<i64: 12, 128>}, {transform_indices = @transform_2, window_bounds = array<i64: 32, 128>}]} {
    %c0 = arith.constant 0 : index
    %c0_0 = arith.constant 0 : index
    %0 = vector.load %arg2[%c0, %c0_0] : memref<32x12xf32, #tpu.memory_space<vmem>>, vector<32x12xf32>
    %c0_1 = arith.constant 0 : index
    %c0_2 = arith.constant 0 : index
    %1 = vector.load %arg3[%c0_1, %c0_2] : memref<12x128xf32, #tpu.memory_space<vmem>>, vector<12x128xf32>
    %cst = arith.constant dense<0.000000e+00> : vector<32x128xf32>
    %2 = tpu.matmul %0, %1, %cst {dimension_numbers = #tpu.dot_dimension_numbers<[1], [0], [0], [1], [0, 0, 1, 1], [], []>} : vector<32x12xf32>, vector<12x128xf32>, vector<32x128xf32> -> vector<32x128xf32>
    %c0_3 = arith.constant 0 : index
    %c0_4 = arith.constant 0 : index
    %3 = vector.load %arg4[%c0_3, %c0_4] : memref<32x128xf32, #tpu.memory_space<vmem>>, vector<32x128xf32>
    tpu.vector_store %arg4[%c0_3, %c0_4], %2 {strides = array<i32>} : memref<32x128xf32, #tpu.memory_space<vmem>>, vector<32x128xf32>,
    return
  }
  func.func @transform_0(%arg0: i32, %arg1: i32) -> (i32, i32) {
    %c0_i32 = arith.constant 0 : i32
    %c0_i32_0 = arith.constant 0 : i32
    return %arg0, %c0_i32 : i32, i32
  }
  func.func @transform_1(%arg0: i32, %arg1: i32) -> (i32, i32) {
    %c0_i32 = arith.constant 0 : i32
    %c0_i32_0 = arith.constant 0 : i32
    return %c0_i32, %arg1 : i32, i32
  }
  func.func @transform_2(%arg0: i32, %arg1: i32) -> (i32, i32) {
    %c0_i32 = arith.constant 0 : i32
    return %arg0, %arg1 : i32, i32
  }
}

</mosaic_0001>

<llo_original>
// kernel: tpu_custom_call.1
$region0: #{tpu_custom_call.1}
  #allocation0 [shape = 'u32[]', space=smem, size = 0x4, offset = 0x4, fixed_abs, tag = 'smem constant byte address 0x4 - core index']
  #allocation1 [shape = 'u32[72,128]{1,0:T(1,128)}', space=vmem, size = 0x9000, scoped, tag = 'internal scratch']
  %s0 = inlined_call_operand.vmem [shape: f32[32,12], index: 0, kind: input, shape index: {}]
  %s1 = inlined_call_operand.vmem [shape: f32[12,128], index: 1, kind: input, shape index: {}]
  %s2 = inlined_call_operand.hbm [shape: f32[32,128], index: 2, kind: output, shape index: {}]
  %s3 = sld [smem:[#allocation0]]
  $region18: #{tpu_custom_call.1} parent=0
    _
  %s5 = ssub.s32 1, %s3
  %s6 = scalar_select 0, %s5, %s3
  $region1: #{tpu_custom_call.1} parent=0
    #allocation2 [shape = 'u8[16384]{0}', space=vmem, size = 0x4000, scoped, tag = 'output window, operand 0, single buffered']
    #allocation3 [shape = 's32[1]{0}', space=sflag, size = 0x4, scoped, tag = 'scoped memory for tpu_custom_call.1']
    %7 = vsyncpa [#allocation3], 0
    // Predicated region
    $region2: #{tpu_custom_call.1} parent=1 // pred_check
      _
    $region3: #{tpu_custom_call.1} parent=1 // pred_check_branch
      %9 = sbr.rel (0) target = $region5
    $region4: #{tpu_custom_call.1} parent=1 // pred_region
      _
    $region5: #{tpu_custom_call.1} parent=1 // pred_fallthru
      _
    // Predicated region
    $region6: #{tpu_custom_call.1} parent=1 // pred_check
      _
    $region7: #{tpu_custom_call.1} parent=1 // pred_check_branch
      %11 = sbr.rel (0) target = $region9
    $region8: #{tpu_custom_call.1} parent=1 // pred_region
      _
    $region9: #{tpu_custom_call.1} parent=1 // pred_fallthru
      _
    %v12 = vld [vmem:[%s0] sm:$0xff]
    %v13 = vld [vmem:[%s0 + $0x8] sm:$0xff]
    %v14 = vld [vmem:[%s0 + $0x10] sm:$0xff]
    %v15 = vld [vmem:[%s0 + $0x18] sm:$0xff]
    %v16 = vld [vmem:[%s1] sm:$0xff]
    %v17 = vld [vmem:[%s1 + $0x8] sm:$0xf]
    %vm18 = vcmask 97280
    %v20 = vsel %vm18, %v12, 0
    %v23 = vsel %vm18, %v13, 0
    %v26 = vsel %vm18, %v14, 0
    %v29 = vsel %vm18, %v15, 0
    %vm31 = vcmask 1043456
    %v33 = vsel %vm31, %v17, 0
    %35 = vmatpush.msra.mxu0 0.0
    %36 = vmatpush.msra.mxu0 0.0
    %37 = vmatpush.msra.mxu0 0.0
    %38 = vmatpush.msra.mxu0 0.0
    %39 = vmatpush.msra.mxu0 0.0
    %40 = vmatpush.msra.mxu0 0.0
    %41 = vmatpush.msra.mxu0 0.0
    %42 = vmatpush.msra.mxu0 0.0
    %43 = vmatpush.msra.mxu0 0.0
    %44 = vmatpush.msra.mxu0 0.0
    %45 = vmatpush.msra.mxu0 0.0
    %46 = vmatpush.msra.mxu0 0.0
    %47 = vmatpush.msra.mxu0 0.0
    %48 = vmatpush.msra.mxu0 0.0
    %49 = vmatpush.msra.mxu0 %v33
    %50 = vmatpush.msra.mxu0 %v16
    %51 = vmatmul.f32.gmra.mxu0 %v20
    %v52 = vpop.f32.mrf.mxu0
    %v53 = vadd.f32 0.0, %v52
    %54 = vmatmul.f32.gmra.mxu0 %v23
    %v55 = vpop.f32.mrf.mxu0
    %v56 = vadd.f32 0.0, %v55
    %57 = vmatmul.f32.gmra.mxu0 %v26
    %v58 = vpop.f32.mrf.mxu0
    %v59 = vadd.f32 0.0, %v58
    %60 = vmatmul.f32.gmra.mxu0 %v29
    %v61 = vpop.f32.mrf.mxu0
    %v62 = vadd.f32 0.0, %v61
    %63 = vdwg.mxu0
    %64 = vst [vmem:[#allocation2] sm:$0xff] %v53
    %65 = vst [vmem:[#allocation2 + $0x8] sm:$0xff] %v56
    %66 = vst [vmem:[#allocation2 + $0x10] sm:$0xff] %v59
    %67 = vst [vmem:[#allocation2 + $0x18] sm:$0xff] %v62
    // Predicated region
    $region10: #{tpu_custom_call.1} parent=1 // pred_check
      _
    $region11: #{tpu_custom_call.1} parent=1 // pred_check_branch
      %69 = sbr.rel (0) target = $region13
    $region12: #{tpu_custom_call.1} parent=1 // pred_region
      %71 = vsyncadd [#allocation3], 0
      %s72 = sshll.u32 [#allocation2], 4
      %s73 = int_to_ptr.vmem [resolvable:$true] %s72
      %s74 = sshll.u32 %s2, 4
      %s75 = int_to_ptr.hbm [resolvable:$true] %s74
      %80 = dma.vmem_to_hbm [thread:$0]  %s73, 512, %s75, [#allocation3], 128, 128, 8
    $region13: #{tpu_custom_call.1} parent=1 // pred_fallthru
      _
    // Predicated region
    $region14: #{tpu_custom_call.1} parent=1 // pred_check
      _
    $region15: #{tpu_custom_call.1} parent=1 // pred_check_branch
      %82 = sbr.rel (0) target = $region17
    $region16: #{tpu_custom_call.1} parent=1 // pred_region
      %84 = dma.done [#allocation3], 512
    $region17: #{tpu_custom_call.1} parent=1 // pred_fallthru
      _
    %85 = vsyncpa [#allocation3], 1

</llo_original>
